<compile_context>
chip_gen: v6e
topology: v6e:2x2x1
jax: 0.10.0
libtpu: 0.0.40
codegen_flags: <defaults>
</compile_context>

<pallas_src>
import numpy as np
import jax
import jax.numpy as jnp
from jax import lax
from jax.experimental import pallas as pl
from jax.experimental.pallas import tpu as pltpu

# ODE solver options (ODEBlock.__init__ reads these from argparse; fixed here)
METHOD = "Euler"
T0 = 0.0
T1 = 1.0
H_STEP = 0.25
N_STEPS = int(round((T1 - T0) / H_STEP))
EPS = 1e-5  # nn.GroupNorm default eps

# ---------------------------------------------------------------------------
# pltpu.roll direction probe (it is documented to follow jnp.roll, i.e.
# result[i] = x[i - shift]; a one-time runtime probe makes the stencil shifts
# robust across jax versions either way).
# ---------------------------------------------------------------------------
_ROLL_LIKE_JNP = None


def _roll_like_jnp():
    global _ROLL_LIKE_JNP
    if _ROLL_LIKE_JNP is None:
        def probe(x_ref, o_ref):
            o_ref[...] = pltpu.roll(x_ref[...], 1, 1)

        xp = jnp.broadcast_to(jnp.arange(128, dtype=jnp.float32)[None, :], (8, 128))
        r = pl.pallas_call(
            probe, out_shape=jax.ShapeDtypeStruct((8, 128), jnp.float32))(xp)
        _ROLL_LIKE_JNP = bool(jax.device_get(r)[0, 0] == 127.0)
    return _ROLL_LIKE_JNP


# ---------------------------------------------------------------------------
# Kernel
# ---------------------------------------------------------------------------
def _make_kernel(Cp, H, W, HW, *, roll_like_jnp):
    """Per-sample ODEBlock Euler solve on a (Cp, H*W) lane-dense state."""

    taps = [(dy, dx) for dy in (-1, 0, 1) for dx in (-1, 0, 1)]
    inv_hw = 1.0 / HW

    def shift_amount(s):
        # want shifted[p] == v[p + s]
        return ((-s) if roll_like_jnp else s) % HW

    def kernel(x_ref, p_ref, w1_ref, w2_ref, s1_ref, s2_ref, m_ref, o_ref):
        # ---- loop-invariant setup, hoisted out of the unrolled Euler loop ----
        g1 = p_ref[:, 0:1]; b1 = p_ref[:, 1:2]
        g2 = p_ref[:, 2:3]; b2 = p_ref[:, 3:4]
        g3 = p_ref[:, 4:5]; b3 = p_ref[:, 5:6]
        cb1 = p_ref[:, 6:7]; cb2 = p_ref[:, 7:8]
        w1m = w1_ref[...]                              # (Cp, 9*Cp)
        w2m = w2_ref[...]
        s1m = s1_ref[...]                              # (Cp, HW) t-channel map conv1
        s2m = s2_ref[...]
        masks = [m_ref[k] for k in range(9)]           # 0/1 boundary masks, (Cp, HW)
        w1_taps = [w1m[:, k * Cp:(k + 1) * Cp] for k in range(9)]   # (Cp, Cp) each
        w2_taps = [w2m[:, k * Cp:(k + 1) * Cp] for k in range(9)]

        def group_norm(v, gamma, beta):
            # nn.GroupNorm(min(32, C), C) with C <= 32 -> per-channel stats over H*W.
            # Fused one-pass statistics + single-FMA affine.
            sum1 = jnp.sum(v, axis=1, keepdims=True)
            sumsq = jnp.sum(v * v, axis=1, keepdims=True)
            mean = sum1 * inv_hw
            var = sumsq * inv_hw - mean * mean
            a = gamma * lax.rsqrt(var + EPS)
            return v * a + (beta - mean * a)

        def conv3x3(h, wtaps, bias_col, smap, t):
            # ConcatConv2d: 3x3 'SAME' conv; the constant-t input channel is folded
            # into t * smap (smap is border-corrected in the wrapper).
            acc = bias_col + t * smap
            for k, (dy, dx) in enumerate(taps):
                s = dy * W + dx
                src = h if s == 0 else pltpu.roll(h, shift_amount(s), 1)
                if not (dy == 0 and dx == 0):
                    src = src * masks[k]               # zero wrapped/out-of-image pixels
                acc = acc + jnp.dot(wtaps[k], src,
                                    preferred_element_type=jnp.float32)
            return acc

        def odefunc(v, t):
            h1 = jnp.maximum(group_norm(v, g1, b1), 0.0)
            c1 = conv3x3(h1, w1_taps, cb1, s1m, t)
            h2 = jnp.maximum(group_norm(c1, g2, b2), 0.0)
            c2 = conv3x3(h2, w2_taps, cb2, s2m, t)
            return group_norm(c2, g3, b3)

        # ---- fixed-step Euler, fully unrolled; state stays in values ----
        v = x_ref[...]
        for step in range(N_STEPS):
            t = T0 + step * H_STEP
            v = v + H_STEP * odefunc(v, t)
        o_ref[...] = v                                  # single lane-dense store

    return kernel


# ---------------------------------------------------------------------------
# Wrapper
# ---------------------------------------------------------------------------
def ode_block_forward(x_nchw, params):
    """ODEBlock.forward: x (NCHW, like PyTorch) -> out (NCHW, same shape)."""
    N, C, H, W = x_nchw.shape
    HW = H * W
    if C > 32:
        # TODO(synk): nn.GroupNorm(min(32, C), C) groups channels when C > 32;
        # this kernel assumes per-channel statistics (num_groups == C).
        raise NotImplementedError("kernel assumes num_groups == C (requires C <= 32)")
    Cp = ((C + 7) // 8) * 8      # pad channels to a full sublane group
    f32 = jnp.float32

    g1, b1, g2, b2, g3, b3, w1, cb1, w2, cb2 = params

    def pad_c(v):
        return jnp.pad(v.astype(f32), (0, Cp - C))

    def prep_conv(w, cb):
        # Split ConcatConv2d weights (HWIO, input channel 0 = time) into spatial taps
        # and the constant-t taps; build the (Cout, 9*Cin) tap matrix used by the
        # kernel and the border-corrected per-pixel time map.
        w = w.astype(f32)
        wt = w[:, :, 0, :]                                   # (3, 3, C)
        ws = w[:, :, 1:, :]                                  # (3, 3, C, C)
        ws = jnp.pad(ws, ((0, 0), (0, 0), (0, Cp - C), (0, Cp - C)))
        wt = jnp.pad(wt, ((0, 0), (0, 0), (0, Cp - C)))
        wmat = jnp.transpose(ws, (3, 0, 1, 2)).reshape(Cp, 9 * Cp)   # [co, k*Cp + ci]
        ones = jnp.ones((1, H, W, 1), f32)
        smap = lax.conv_general_dilated(                     # sum of in-bounds t-taps
            ones, wt.reshape(3, 3, 1, Cp), (1, 1), "SAME",
            dimension_numbers=("NHWC", "HWIO", "NHWC"),
            precision=lax.Precision.HIGHEST)[0]              # (H, W, Cp)
        smap = jnp.transpose(smap, (2, 0, 1)).reshape(Cp, HW)
        return wmat, smap, pad_c(cb)

    w1m, s1m, cb1p = prep_conv(w1, cb1)
    w2m, s2m, cb2p = prep_conv(w2, cb2)

    # Pack small per-channel vectors as columns of one (Cp, 8) array.
    pvec = jnp.stack([pad_c(g1), pad_c(b1), pad_c(g2), pad_c(b2),
                      pad_c(g3), pad_c(b3), cb1p, cb2p], axis=1)

    # Boundary masks for the 9 conv taps in the flattened (Cp, HW) layout.
    ry = jnp.arange(H)[:, None]
    rx = jnp.arange(W)[None, :]
    mlist = []
    for dy in (-1, 0, 1):
        for dx in (-1, 0, 1):
            ok = ((ry + dy >= 0) & (ry + dy < H) & (rx + dx >= 0) & (rx + dx < W))
            mlist.append(jnp.broadcast_to(ok.reshape(1, HW), (Cp, HW)))
    masks = jnp.stack(mlist, axis=0).astype(f32)             # (9, Cp, HW)

    # Lane-dense state layout: NCHW -> (N, Cp, H*W); pixels on the lane axis.
    x = jnp.pad(x_nchw.astype(f32), ((0, 0), (0, Cp - C), (0, 0), (0, 0)))
    x = x.reshape(N, Cp, HW)

    kernel = _make_kernel(Cp, H, W, HW, roll_like_jnp=_roll_like_jnp())

    # TODO(synk): for large C / H*W, add spatial tiling with explicit halo exchange;
    # here one sample fits comfortably in VMEM so we only tile (parallel) over batch.
    out = pl.pallas_call(
        kernel,
        out_shape=jax.ShapeDtypeStruct((N, Cp, HW), f32),
        grid=(N,),
        in_specs=[
            pl.BlockSpec((None, Cp, HW), lambda n: (n, 0, 0)),   # one sample / core
            pl.BlockSpec((Cp, 8), lambda n: (0, 0)),             # gamma/beta/bias pack
            pl.BlockSpec((Cp, 9 * Cp), lambda n: (0, 0)),        # conv1 tap matrix
            pl.BlockSpec((Cp, 9 * Cp), lambda n: (0, 0)),        # conv2 tap matrix
            pl.BlockSpec((Cp, HW), lambda n: (0, 0)),            # conv1 t-channel map
            pl.BlockSpec((Cp, HW), lambda n: (0, 0)),            # conv2 t-channel map
            pl.BlockSpec((9, Cp, HW), lambda n: (0, 0, 0)),      # boundary masks
        ],
        out_specs=pl.BlockSpec((None, Cp, HW), lambda n: (n, 0, 0)),
        compiler_params=pltpu.CompilerParams(
            dimension_semantics=("parallel",),    # batch-parallel (both TCs on v7x)
            vmem_limit_bytes=32 * 1024 * 1024,
        ),
    )(x, pvec, w1m, w2m, s1m, s2m, masks)

    return out[:, :C, :].reshape(N, C, H, W)


# ---------------------------------------------------------------------------
# Pure-JAX reference (same math, XLA conv) for correctness checking.
# ---------------------------------------------------------------------------
def ode_block_reference(x_nchw, params):
    N, C, H, W = x_nchw.shape
    x = jnp.transpose(x_nchw, (0, 2, 3, 1)).astype(jnp.float32)
    g1, b1, g2, b2, g3, b3, w1, cb1, w2, cb2 = params

    def gn(v, gamma, beta):
        mean = jnp.mean(v, axis=(1, 2), keepdims=True)
        var = jnp.mean((v - mean) ** 2, axis=(1, 2), keepdims=True)
        return ((v - mean) * lax.rsqrt(var + EPS)) * gamma.reshape(1, 1, 1, C) \
               + beta.reshape(1, 1, 1, C)

    def cc(v, t, w, b):
        tt = jnp.full((N, H, W, 1), t, jnp.float32)
        vt = jnp.concatenate([tt, v], axis=-1)
        y = lax.conv_general_dilated(vt, w, (1, 1), "SAME",
                                     dimension_numbers=("NHWC", "HWIO", "NHWC"),
                                     precision=lax.Precision.HIGHEST)
        return y + b.reshape(1, 1, 1, C)

    def f(v, t):
        h1 = jax.nn.relu(gn(v, g1, b1))
        c1 = cc(h1, t, w1, cb1)
        h2 = jax.nn.relu(gn(c1, g2, b2))
        c2 = cc(h2, t, w2, cb2)
        return gn(c2, g3, b3)

    v = x
    for k in range(N_STEPS):
        v = v + H_STEP * f(v, T0 + k * H_STEP)
    return jnp.transpose(v, (0, 3, 1, 2))


if __name__ == "__main__":
    key = jax.random.PRNGKey(0)
    ks = jax.random.split(key, 5)

    N, C, H, W = 2, 4, 16, 16
    x = jax.random.normal(ks[0], (N, C, H, W), jnp.float32)

    # GroupNorm affine params (PyTorch default init: weight=1, bias=0)
    g1 = jnp.ones((C,), jnp.float32); b1 = jnp.zeros((C,), jnp.float32)
    g2 = jnp.ones((C,), jnp.float32); b2 = jnp.zeros((C,), jnp.float32)
    g3 = jnp.ones((C,), jnp.float32); b3 = jnp.zeros((C,), jnp.float32)
    # ConcatConv2d weights in HWIO, input channel 0 is the time channel
    w1 = 0.1 * jax.random.normal(ks[1], (3, 3, C + 1, C), jnp.float32)
    cb1 = 0.05 * jax.random.normal(ks[2], (C,), jnp.float32)
    w2 = 0.1 * jax.random.normal(ks[3], (3, 3, C + 1, C), jnp.float32)
    cb2 = 0.05 * jax.random.normal(ks[4], (C,), jnp.float32)
    params = (g1, b1, g2, b2, g3, b3, w1, cb1, w2, cb2)

    _roll_like_jnp()   # pin pltpu.roll's rotation direction before tracing

    out = jax.jit(ode_block_forward)(x, params)
    out = jax.block_until_ready(out)

    ref = ode_block_reference(x, params)
    assert out.shape == x.shape and out.dtype == jnp.float32
    # Tolerance accounts for MXU matmuls at default f32 precision vs the
    # HIGHEST-precision XLA conv reference, over 4 accumulated Euler steps.
    np.testing.assert_allclose(np.asarray(out), np.asarray(ref), rtol=1e-2, atol=1e-2)
    print("KERNEL_OK")
</pallas_src>

<mosaic_0001>
module attributes {stable_mosaic.version = 11 : i64} {
  func.func @probe(%arg0: memref<8x128xf32, #tpu.memory_space<vmem>>, %arg1: memref<8x128xf32, #tpu.memory_space<vmem>>) attributes {dimension_semantics = [], scalar_prefetch = 0 : i64, scratch_operands = 0 : i64, tpu.core_type = #tpu.core_type<tc>} {
    %c0 = arith.constant 0 : index
    %c0_0 = arith.constant 0 : index
    %0 = vector.load %arg0[%c0, %c0_0] : memref<8x128xf32, #tpu.memory_space<vmem>>, vector<8x128xf32>
    %c1_i32 = arith.constant 1 : i32
    %1 = tpu.dynamic_rotate %0 by %c1_i32 dim 1 : vector<8x128xf32>, i32 -> vector<8x128xf32>
    %c0_1 = arith.constant 0 : index
    %c0_2 = arith.constant 0 : index
    %2 = vector.load %arg1[%c0_1, %c0_2] : memref<8x128xf32, #tpu.memory_space<vmem>>, vector<8x128xf32>
    tpu.vector_store %arg1[%c0_1, %c0_2], %1 {strides = array<i32>} : memref<8x128xf32, #tpu.memory_space<vmem>>, vector<8x128xf32>,
    return
  }
}

</mosaic_0001>

<llo_original>
// kernel: tpu_custom_call.1
$region0: #{tpu_custom_call.1}
  #allocation0 [shape = 'u32[]', space=smem, size = 0x4, offset = 0x4, fixed_abs, tag = 'smem constant byte address 0x4 - core index']
  #allocation1 [shape = 'u32[144,128]{1,0:T(1,128)}', space=vmem, size = 0x12000, scoped, tag = 'internal scratch']
  %s0 = inlined_call_operand.hbm [shape: f32[8,128], index: 0, kind: input, shape index: {}]
  %s1 = inlined_call_operand.hbm [shape: f32[8,128], index: 1, kind: output, shape index: {}]
  %s2 = sld [smem:[#allocation0]]
  $region18: #{tpu_custom_call.1} parent=0
    _
  %s4 = ssub.s32 1, %s2
  %s5 = scalar_select 0, %s4, %s2
  $region1: #{tpu_custom_call.1} parent=0
    #allocation2 [shape = 'u8[4096]{0}', space=vmem, size = 0x1000, scoped, tag = 'input window, operand 0, single buffered']
    #allocation3 [shape = 's32[1]{0}', space=sflag, size = 0x4, scoped, tag = 'scoped memory for tpu_custom_call.1']
    #allocation4 [shape = 's32[1]{0}', space=sflag, size = 0x4, scoped, tag = 'scoped memory for tpu_custom_call.1']
    #allocation5 [shape = 'u8[4096]{0}', space=vmem, size = 0x1000, scoped, tag = 'output window, operand 0, single buffered']
    %6 = vsyncpa [#allocation3], 0
    %7 = vsyncpa [#allocation4], 0
    // Predicated region
    $region2: #{tpu_custom_call.1} parent=1 // pred_check
      _
    $region3: #{tpu_custom_call.1} parent=1 // pred_check_branch
      %9 = sbr.rel (0) target = $region5
    $region4: #{tpu_custom_call.1} parent=1 // pred_region
      %s11 = ssub.s32 128, 128
      %12 = vsyncadd [#allocation3], %s11
      %s14 = sshll.u32 [#allocation2], 4
      %s15 = int_to_ptr.vmem [resolvable:$true] %s14
      %17 = dma.hbm_to_vmem [thread:$0]  %s0, 128, %s15, [#allocation3]
    $region5: #{tpu_custom_call.1} parent=1 // pred_fallthru
      _
    // Predicated region
    $region6: #{tpu_custom_call.1} parent=1 // pred_check
      _
    $region7: #{tpu_custom_call.1} parent=1 // pred_check_branch
      %19 = sbr.rel (0) target = $region9
    $region8: #{tpu_custom_call.1} parent=1 // pred_region
      %20 = dma.done [#allocation3], 128
    $region9: #{tpu_custom_call.1} parent=1 // pred_fallthru
      _
    %v21 = vld [vmem:[#allocation2] sm:$0xff]
    %22 = vrot.lane.b32.xlu0 %v21, 1
    %v23 = vpop.permute.xlu0 %22
    %24 = vst [vmem:[#allocation5] sm:$0xff] %v23
    // Predicated region
    $region10: #{tpu_custom_call.1} parent=1 // pred_check
      _
    $region11: #{tpu_custom_call.1} parent=1 // pred_check_branch
      %26 = sbr.rel (0) target = $region13
    $region12: #{tpu_custom_call.1} parent=1 // pred_region
      %s28 = ssub.s32 128, 128
      %29 = vsyncadd [#allocation4], %s28
      %s31 = sshll.u32 [#allocation5], 4
      %s32 = int_to_ptr.vmem [resolvable:$true] %s31
      %34 = dma.vmem_to_hbm [thread:$0]  %s32, 128, %s1, [#allocation4]
    $region13: #{tpu_custom_call.1} parent=1 // pred_fallthru
      _
    // Predicated region
    $region14: #{tpu_custom_call.1} parent=1 // pred_check
      _
    $region15: #{tpu_custom_call.1} parent=1 // pred_check_branch
      %36 = sbr.rel (0) target = $region17
    $region16: #{tpu_custom_call.1} parent=1 // pred_region
      %37 = dma.done [#allocation4], 128
    $region17: #{tpu_custom_call.1} parent=1 // pred_fallthru
      _
    %38 = vsyncpa [#allocation3], 1
    %39 = vsyncpa [#allocation4], 1

</llo_original>
